<compile_context>
chip_gen: v7x
topology: tpu7x:2x2x1
jax: 0.10.0
libtpu: 0.0.40
codegen_flags: <defaults>
</compile_context>

<pallas_src>
import jax
import jax.numpy as jnp
from jax.experimental import pallas as pl
from jax.experimental.pallas import tpu as pltpu


def _round_up(x: int, m: int) -> int:
    return (x + m - 1) // m * m


def _mismatch_kernel(gen_ref, tgt_ref, out_ref):
    # VPU elementwise compare; accumulate in int32 (exact), then a single lane
    # (last-axis) reduction on the XLU and ONE cast per row instead of a full
    # [TB, S] int->f32 convert.
    neq = (gen_ref[...] != tgt_ref[...]).astype(jnp.int32)   # (TB, S)
    counts = jnp.sum(neq, axis=-1, keepdims=True)            # (TB, 1) int32
    out_ref[...] = counts.astype(jnp.float32)                # (TB, 1) f32
    # NOTE: output traffic is 1/(2*S) of input traffic, so the masked (last
    # dim == 1) store is noise here; a lane-dense (1, TB) slab would need an
    # in-kernel sublane->lane relayout for no measurable gain at this size.


def cer_mismatch_counts(
    generated_seq: jax.Array,
    target_seq: jax.Array,
    *,
    max_block_bytes: int = 4 << 20,  # per-input per-step block cap (~4 MiB)
) -> jax.Array:
    """Per-sequence count of mismatched tokens (the CER numerator hot path).

    generated_seq, target_seq: integer token ids, shape [B, S] (any int dtype;
      narrower dtypes directly reduce HBM traffic — this kernel is mem-bound).
    returns: float32 [B, 1]
    """
    assert generated_seq.shape == target_seq.shape
    assert generated_seq.dtype == target_seq.dtype
    B, S = generated_seq.shape
    itemsize = jnp.dtype(generated_seq.dtype).itemsize

    # Row-tile granularity: keep TB a multiple of the packed sublane count
    # (8 for int32, 16 for int16, 32 for int8) so compares stay one-op-per-vreg.
    sub = 8 * max(1, 4 // itemsize)

    # Largest row tile whose (TB, S) input block stays under max_block_bytes:
    # 2 inputs x 2 pipeline buffers x block then fits comfortably inside the
    # scoped-VMEM budget on every generation (v7x physical VMEM is only 64 MiB).
    rows_budget = max(sub, (max_block_bytes // (S * itemsize)) // sub * sub)
    if B <= rows_budget:
        TB = _round_up(B, sub)   # single tile; block == (padded) full array
        PB = TB
    else:
        TB = rows_budget
        PB = _round_up(B, TB)
    grid_b = PB // TB

    gen, tgt = generated_seq, target_seq
    if PB != B:
        # Pad both with identical values (zeros) so padded rows count 0 mismatches.
        pad = ((0, PB - B), (0, 0))
        gen = jnp.pad(gen, pad)
        tgt = jnp.pad(tgt, pad)

    # TODO(synk): S is kept un-tiled (OCR post-correction sequences are short);
    # for very long S add a trailing "arbitrary" grid axis with a resident
    # per-row accumulator (pattern P3).
    counts = pl.pallas_call(
        _mismatch_kernel,
        out_shape=jax.ShapeDtypeStruct((PB, 1), jnp.float32),
        grid=(grid_b,),
        in_specs=[
            pl.BlockSpec((TB, S), lambda i: (i, 0)),
            pl.BlockSpec((TB, S), lambda i: (i, 0)),
        ],
        out_specs=pl.BlockSpec((TB, 1), lambda i: (i, 0)),
        compiler_params=pltpu.CompilerParams(
            # Batch tiles are independent: let v7x shard them across its 2 TCs
            # (no-op on single-TC v5e/v6e).
            dimension_semantics=("parallel",),
            vmem_limit_bytes=32 * 1024 * 1024,
        ),
        cost_estimate=pl.CostEstimate(
            flops=PB * S,
            transcendentals=0,
            bytes_accessed=2 * PB * S * itemsize + 4 * PB,
        ),
    )(gen, tgt)

    return counts[:B, :]


def cer_loss_forward(generated_seq, target_seq):
    """Exact semantic reproduction of CERLoss.forward: always returns None."""
    # TODO(synk): reference forward is an unimplemented stub (returns None);
    # no loss computation exists to translate, so we return None verbatim.
    loss = None
    return loss


if __name__ == "__main__":
    key = jax.random.PRNGKey(0)
    kg, kt = jax.random.split(key)

    # Small shapes consistent with a seq-to-seq loss: batch=2, seq=8.
    B, S, VOCAB = 2, 8, 32
    generated_seq = jax.random.randint(kg, (B, S), 0, VOCAB, dtype=jnp.int32)
    target_seq = jax.random.randint(kt, (B, S), 0, VOCAB, dtype=jnp.int32)

    # 1) Single-tile path (B padded to the sublane multiple).
    counts = jax.block_until_ready(cer_mismatch_counts(generated_seq, target_seq))
    ref = jnp.sum(
        (generated_seq != target_seq).astype(jnp.float32), axis=-1, keepdims=True
    )
    assert counts.shape == (B, 1)
    assert jnp.allclose(counts, ref), (counts, ref)

    # 2) Multi-tile pipelined path (+ narrow int16 tokens for bandwidth), with a
    #    small block budget to force several grid steps and batch padding.
    B2, S2 = 300, 256
    kg2, kt2 = jax.random.split(jax.random.PRNGKey(1))
    g2 = jax.random.randint(kg2, (B2, S2), 0, VOCAB, dtype=jnp.int32).astype(jnp.int16)
    t2 = jax.random.randint(kt2, (B2, S2), 0, VOCAB, dtype=jnp.int32).astype(jnp.int16)
    c2 = jax.block_until_ready(
        cer_mismatch_counts(g2, t2, max_block_bytes=64 * 1024)
    )
    r2 = jnp.sum((g2 != t2).astype(jnp.float32), axis=-1, keepdims=True)
    assert c2.shape == (B2, 1)
    assert jnp.allclose(c2, r2)

    # 3) Reproduce the module's forward semantics exactly: returns None.
    loss = cer_loss_forward(generated_seq, target_seq)
    assert loss is None

    print("KERNEL_OK")
</pallas_src>

<mosaic_0001>
module attributes {stable_mosaic.version = 11 : i64} {
  func.func @_mismatch_kernel(%arg0: i32, %arg1: memref<8x8xi32, #tpu.memory_space<vmem>>, %arg2: memref<8x8xi32, #tpu.memory_space<vmem>>, %arg3: memref<8x1xf32, #tpu.memory_space<vmem>>) attributes {dimension_semantics = [#tpu.dimension_semantics<parallel>], iteration_bounds = array<i64: 1>, scalar_prefetch = 0 : i64, scratch_operands = 0 : i64, tpu.core_type = #tpu.core_type<tc>, window_params = [{transform_indices = @transform_0, window_bounds = array<i64: 8, 8>}, {transform_indices = @transform_1, window_bounds = array<i64: 8, 8>}, {transform_indices = @transform_2, window_bounds = array<i64: 8, 1>}]} {
    %c0 = arith.constant 0 : index
    %c0_0 = arith.constant 0 : index
    %0 = vector.load %arg1[%c0, %c0_0] : memref<8x8xi32, #tpu.memory_space<vmem>>, vector<8x8xi32>
    %c0_1 = arith.constant 0 : index
    %c0_2 = arith.constant 0 : index
    %1 = vector.load %arg2[%c0_1, %c0_2] : memref<8x8xi32, #tpu.memory_space<vmem>>, vector<8x8xi32>
    %2 = arith.cmpi ne, %0, %1 : vector<8x8xi32>
    %3 = arith.extui %2 : vector<8x8xi1> to vector<8x8xi32>
    %cst = arith.constant dense<0> : vector<8xi32>
    %4 = vector.multi_reduction <add>, %3, %cst [1] : vector<8x8xi32> to vector<8xi32>
    %5 = vector.shape_cast %4 : vector<8xi32> to vector<8x1xi32>
    %6 = arith.sitofp %5 : vector<8x1xi32> to vector<8x1xf32>
    %c0_3 = arith.constant 0 : index
    %c0_4 = arith.constant 0 : index
    %7 = vector.load %arg3[%c0_3, %c0_4] : memref<8x1xf32, #tpu.memory_space<vmem>>, vector<8x1xf32>
    tpu.vector_store %arg3[%c0_3, %c0_4], %6 {strides = array<i32>} : memref<8x1xf32, #tpu.memory_space<vmem>>, vector<8x1xf32>,
    return
  }
  func.func @transform_0(%arg0: i32) -> (i32, i32) {
    %c0_i32 = arith.constant 0 : i32
    %c0_i32_0 = arith.constant 0 : i32
    return %arg0, %c0_i32 : i32, i32
  }
  func.func @transform_1(%arg0: i32) -> (i32, i32) {
    %c0_i32 = arith.constant 0 : i32
    %c0_i32_0 = arith.constant 0 : i32
    return %arg0, %c0_i32 : i32, i32
  }
  func.func @transform_2(%arg0: i32) -> (i32, i32) {
    %c0_i32 = arith.constant 0 : i32
    %c0_i32_0 = arith.constant 0 : i32
    return %arg0, %c0_i32 : i32, i32
  }
}

</mosaic_0001>

<llo_original>
// kernel: tpu_custom_call.1
$region0: #{tpu_custom_call.1}
  #allocation0 [shape = 'u32[]', space=smem, size = 0x4, offset = 0x4, fixed_abs, tag = 'smem constant byte address 0x4 - core index']
  #allocation1 [shape = 'u32[144,128]{1,0:T(1,128)}', space=vmem, size = 0x12000, scoped, tag = 'internal scratch']
  %s0 = inlined_call_operand.hbm [shape: s32[8,8], index: 0, kind: input, shape index: {}]
  %s1 = inlined_call_operand.hbm [shape: s32[8,8], index: 1, kind: input, shape index: {}]
  %s2 = inlined_call_operand.vmem [shape: f32[8,1], index: 2, kind: output, shape index: {}]
  %s3 = sld [smem:[#allocation0]]
  $region26: #{tpu_custom_call.1} parent=0
    _
  %s5 = ssub.s32 1, %s3
  %s6 = scalar_select 0, %s5, %s3
  $region1: #{tpu_custom_call.1} parent=0
    #allocation2 [shape = 'u8[4096]{0}', space=vmem, size = 0x1000, scoped, tag = 'input window, operand 0, single buffered']
    #allocation3 [shape = 's32[1]{0}', space=sflag, size = 0x4, scoped, tag = 'scoped memory for tpu_custom_call.1']
    #allocation4 [shape = 'u8[4096]{0}', space=vmem, size = 0x1000, scoped, tag = 'input window, operand 1, single buffered']
    #allocation5 [shape = 's32[1]{0}', space=sflag, size = 0x4, scoped, tag = 'scoped memory for tpu_custom_call.1']
    %7 = vsyncpa [#allocation3], 0
    %8 = vsyncpa [#allocation5], 0
    // Predicated region
    $region2: #{tpu_custom_call.1} parent=1 // pred_check
      _
    $region3: #{tpu_custom_call.1} parent=1 // pred_check_branch
      %10 = sbr.rel (0) target = $region5
    $region4: #{tpu_custom_call.1} parent=1 // pred_region
      %s12 = ssub.s32 128, 128
      %13 = vsyncadd [#allocation3], %s12
      %s15 = sshll.u32 [#allocation2], 4
      %s16 = int_to_ptr.vmem [resolvable:$true] %s15
      %18 = dma.hbm_to_vmem [thread:$0]  %s0, 128, %s16, [#allocation3]
    $region5: #{tpu_custom_call.1} parent=1 // pred_fallthru
      _
    // Predicated region
    $region6: #{tpu_custom_call.1} parent=1 // pred_check
      _
    $region7: #{tpu_custom_call.1} parent=1 // pred_check_branch
      %20 = sbr.rel (0) target = $region9
    $region8: #{tpu_custom_call.1} parent=1 // pred_region
      %s22 = ssub.s32 128, 128
      %23 = vsyncadd [#allocation5], %s22
      %s25 = sshll.u32 [#allocation4], 4
      %s26 = int_to_ptr.vmem [resolvable:$true] %s25
      %28 = dma.hbm_to_vmem [thread:$0]  %s1, 128, %s26, [#allocation5]
    $region9: #{tpu_custom_call.1} parent=1 // pred_fallthru
      _
    // Predicated region
    $region10: #{tpu_custom_call.1} parent=1 // pred_check
      _
    $region11: #{tpu_custom_call.1} parent=1 // pred_check_branch
      %30 = sbr.rel (0) target = $region13
    $region12: #{tpu_custom_call.1} parent=1 // pred_region
      %31 = dma.done [#allocation3], 128
    $region13: #{tpu_custom_call.1} parent=1 // pred_fallthru
      _
    // Predicated region
    $region14: #{tpu_custom_call.1} parent=1 // pred_check
      _
    $region15: #{tpu_custom_call.1} parent=1 // pred_check_branch
      %33 = sbr.rel (0) target = $region17
    $region16: #{tpu_custom_call.1} parent=1 // pred_region
      %34 = dma.done [#allocation5], 128
    $region17: #{tpu_custom_call.1} parent=1 // pred_fallthru
      _
    %v35 = vld [vmem:[#allocation2] sm:$0xff]
    %v36 = vld [vmem:[#allocation4] sm:$0xff]
    %vm37 = vcmp.ne.s32.totalorder %v35, %v36
    %v38 = vsel %vm37, 1, 0
    %vm39 = vcmask 64512
    %v40 = vsel %vm39, %v38, 0
    %v41 = vand.u32 %v40, 65535
    %v42 = vshrl.u32 %v40, 16
    %v43 = vcvt.s32.f32 %v41
    %v44 = vcvt.s32.f32 %v42
    %45 = vadd.xlane.f32.xlu0 %v43
    %v46 = vpop.xlane.xlu0 %45
    %47 = vadd.xlane.f32.xlu0 %v44
    %v48 = vpop.xlane.xlu0 %47
    %v49 = vcvt.f32.s32 %v46
    %v50 = vcvt.f32.s32 %v48
    %v51 = vshll.u32 %v50, 16
    %v52 = vadd.s32 %v51, %v49
    %v53 = vcvt.s32.f32 %v52
    %vm54 = vcmask 7168
    %55 = vst.msk [vmem:[%s2] sm:$0xff] %vm54, %v53
    // Predicated region
    $region18: #{tpu_custom_call.1} parent=1 // pred_check
      _
    $region19: #{tpu_custom_call.1} parent=1 // pred_check_branch
      %57 = sbr.rel (0) target = $region21
    $region20: #{tpu_custom_call.1} parent=1 // pred_region
      _
    $region21: #{tpu_custom_call.1} parent=1 // pred_fallthru
      _
    // Predicated region
    $region22: #{tpu_custom_call.1} parent=1 // pred_check
      _
    $region23: #{tpu_custom_call.1} parent=1 // pred_check_branch
      %59 = sbr.rel (0) target = $region25
    $region24: #{tpu_custom_call.1} parent=1 // pred_region
      _
    $region25: #{tpu_custom_call.1} parent=1 // pred_fallthru
      _
    %60 = vsyncpa [#allocation3], 1
    %61 = vsyncpa [#allocation5], 1

</llo_original>
